<compile_context>
chip_gen: v7x
topology: tpu7x:2x2x1
jax: 0.10.0
libtpu: 0.0.40
codegen_flags: <defaults>
</compile_context>

<pallas_src>
import functools

import jax
import jax.numpy as jnp
from jax.experimental import pallas as pl
from jax.experimental.pallas import tpu as pltpu


def _round_up(x: int, m: int) -> int:
    return ((x + m - 1) // m) * m


# --------------------------------------------------------------------------
# Kernel bodies
# --------------------------------------------------------------------------
def _linear_bias_single_k_kernel(x_ref, w_ref, b_ref, o_ref):
    # x_ref: (tm, Kp)  w_ref: (Kp, tn)  b_ref: (1, tn)  o_ref: (tm, tn)
    acc = jnp.dot(x_ref[...], w_ref[...], preferred_element_type=jnp.float32)
    o_ref[...] = (acc + b_ref[...].astype(jnp.float32)).astype(o_ref.dtype)


def _linear_bias_tiled_k_kernel(x_ref, w_ref, b_ref, o_ref, acc_ref):
    # x_ref: (tm, tk)  w_ref: (tk, tn)  b_ref: (1, tn)  o_ref: (tm, tn)
    # acc_ref: (tm, tn) f32 scratch, resident across the K axis.
    k = pl.program_id(2)

    @pl.when(k == 0)
    def _():
        acc_ref[...] = jnp.zeros_like(acc_ref)

    acc_ref[...] += jnp.dot(
        x_ref[...], w_ref[...], preferred_element_type=jnp.float32
    )

    @pl.when(k == pl.num_programs(2) - 1)
    def _():
        # Bias added exactly once, in the epilogue, in f32, then cast.
        o_ref[...] = (acc_ref[...] + b_ref[...].astype(jnp.float32)).astype(
            o_ref.dtype
        )


# --------------------------------------------------------------------------
# pallas_call wrappers
# --------------------------------------------------------------------------
def _cost(m_pad, n_pad, k_pad, itemsize):
    return pl.CostEstimate(
        flops=2 * m_pad * n_pad * k_pad,
        transcendentals=0,
        bytes_accessed=(m_pad * k_pad + k_pad * n_pad + m_pad * n_pad + n_pad)
        * itemsize,
    )


def _tiled_linear(x, w_t, b2d, tm, tn, tk):
    """x: (Mp, Kp), w_t: (Kp, Np), b2d: (1, Np); all dims divisible by tiles."""
    m_pad, k_pad = x.shape
    _, n_pad = w_t.shape
    itemsize = jnp.dtype(x.dtype).itemsize

    if k_pad == tk:
        # Single K tile: no reduction axis, no scratch, bias fused directly.
        grid = (m_pad // tm, n_pad // tn)
        return pl.pallas_call(
            _linear_bias_single_k_kernel,
            out_shape=jax.ShapeDtypeStruct((m_pad, n_pad), x.dtype),
            grid_spec=pltpu.PrefetchScalarGridSpec(
                num_scalar_prefetch=0,
                grid=grid,
                in_specs=[
                    pl.BlockSpec((tm, k_pad), lambda i, j: (i, 0)),
                    pl.BlockSpec((k_pad, tn), lambda i, j: (0, j)),
                    pl.BlockSpec((1, tn), lambda i, j: (0, j)),
                ],
                out_specs=pl.BlockSpec((tm, tn), lambda i, j: (i, j)),
            ),
            compiler_params=pltpu.CompilerParams(
                dimension_semantics=("parallel", "parallel"),
            ),
            cost_estimate=_cost(m_pad, n_pad, k_pad, itemsize),
        )(x, w_t, b2d)

    # General path: K reduction across the trailing "arbitrary" grid axis.
    grid = (m_pad // tm, n_pad // tn, k_pad // tk)
    return pl.pallas_call(
        _linear_bias_tiled_k_kernel,
        out_shape=jax.ShapeDtypeStruct((m_pad, n_pad), x.dtype),
        grid_spec=pltpu.PrefetchScalarGridSpec(
            num_scalar_prefetch=0,
            grid=grid,
            in_specs=[
                pl.BlockSpec((tm, tk), lambda i, j, k: (i, k)),
                pl.BlockSpec((tk, tn), lambda i, j, k: (k, j)),
                pl.BlockSpec((1, tn), lambda i, j, k: (0, j)),
            ],
            out_specs=pl.BlockSpec((tm, tn), lambda i, j, k: (i, j)),
            scratch_shapes=[pltpu.VMEM((tm, tn), jnp.float32)],
        ),
        compiler_params=pltpu.CompilerParams(
            dimension_semantics=("parallel", "parallel", "arbitrary"),
        ),
        cost_estimate=_cost(m_pad, n_pad, k_pad, itemsize),
    )(x, w_t, b2d)


@functools.partial(jax.jit, static_argnames=("num_heads", "num_classes"))
def shallow_ensemble_forward(x, weight, bias, *, num_heads, num_classes):
    """x: (B, F); weight: (H*C, F) in PyTorch convention; bias: (H*C,)."""
    batch, num_features = x.shape
    out_dim = num_heads * num_classes
    assert weight.shape == (out_dim, num_features)
    assert bias.shape == (out_dim,)

    # --- pad to MXU/lane-friendly sizes (lane dim -> multiple of 128) ---
    k_pad = _round_up(num_features, 128)
    n_pad = _round_up(out_dim, 128)

    # Tile sizes: capped so double-buffered tiles stay far below the 32 MiB
    # scoped-VMEM default (and v7x's 64 MiB physical VMEM).
    tm = 256 if batch >= 256 else _round_up(batch, 8)
    m_pad = _round_up(batch, tm)
    tn = 256 if (n_pad % 256 == 0 and n_pad >= 256) else 128
    if k_pad <= 1024:
        tk = k_pad  # single-shot K path (no reduction loop, no scratch)
    elif k_pad % 512 == 0:
        tk = 512
    elif k_pad % 256 == 0:
        tk = 256
    else:
        tk = 128

    # Zero-pad operands (zeros in the contraction dim contribute nothing).
    x_p = x
    if (m_pad, k_pad) != (batch, num_features):
        x_p = jnp.pad(x, ((0, m_pad - batch), (0, k_pad - num_features)))
    w_t = weight.T  # (F, H*C)
    if (k_pad, n_pad) != (num_features, out_dim):
        w_t = jnp.pad(w_t, ((0, k_pad - num_features), (0, n_pad - out_dim)))
    b2d = bias
    if n_pad != out_dim:
        b2d = jnp.pad(bias, (0, n_pad - out_dim))
    b2d = b2d.reshape(1, n_pad)

    logits_flat = _tiled_linear(x_p, w_t, b2d, tm, tn, tk)

    # Strip padding; matches PyTorch: .reshape(-1, num_heads, num_classes)
    return logits_flat[:batch, :out_dim].reshape(-1, num_heads, num_classes)


if __name__ == "__main__":
    # Small shapes consistent with the module's forward.
    num_heads = 4
    num_classes = 8
    num_features = 32
    batch = 8

    key = jax.random.PRNGKey(0)
    kx, kw, kb = jax.random.split(key, 3)

    x = jax.random.normal(kx, (batch, num_features), dtype=jnp.float32)
    # PyTorch Linear parameter shapes: weight (H*C, F), bias (H*C,).
    bound = 1.0 / jnp.sqrt(num_features)
    weight = jax.random.uniform(
        kw, (num_heads * num_classes, num_features),
        minval=-bound, maxval=bound, dtype=jnp.float32)
    bias = jax.random.uniform(
        kb, (num_heads * num_classes,),
        minval=-bound, maxval=bound, dtype=jnp.float32)

    logits = shallow_ensemble_forward(
        x, weight, bias, num_heads=num_heads, num_classes=num_classes
    )
    logits = jax.block_until_ready(logits)

    # Reference check in plain JAX (same math as the PyTorch module).
    ref = (x @ weight.T + bias).reshape(-1, num_heads, num_classes)
    assert logits.shape == (batch, num_heads, num_classes)
    assert jnp.allclose(logits, ref, atol=1e-5, rtol=1e-5)

    # Exercise the tiled-K path too (large padded feature dim) for coverage.
    kx2, kw2, kb2 = jax.random.split(jax.random.PRNGKey(1), 3)
    f2, b2 = 1536, 300
    x2 = jax.random.normal(kx2, (b2, f2), dtype=jnp.float32)
    w2 = jax.random.normal(kw2, (num_heads * num_classes, f2),
                           dtype=jnp.float32) * 0.02
    bi2 = jax.random.normal(kb2, (num_heads * num_classes,),
                            dtype=jnp.float32) * 0.02
    out2 = shallow_ensemble_forward(
        x2, w2, bi2, num_heads=num_heads, num_classes=num_classes
    )
    out2 = jax.block_until_ready(out2)
    ref2 = (x2 @ w2.T + bi2).reshape(-1, num_heads, num_classes)
    assert jnp.allclose(out2, ref2, atol=1e-3, rtol=1e-3)

    # TODO(synk): for large deployments with bf16-tolerant heads, cast x / W to
    # bfloat16 (keep preferred_element_type=f32) to double MXU rate & halve DMA.

    print("KERNEL_OK")
</pallas_src>

<mosaic_0001>
module attributes {stable_mosaic.version = 11 : i64} {
  func.func @_linear_bias_single_k_kernel(%arg0: i32, %arg1: i32, %arg2: memref<8x128xf32, #tpu.memory_space<vmem>>, %arg3: memref<128x128xf32, #tpu.memory_space<vmem>>, %arg4: memref<1x128xf32, #tpu.memory_space<vmem>>, %arg5: memref<8x128xf32, #tpu.memory_space<vmem>>) attributes {dimension_semantics = [#tpu.dimension_semantics<parallel>, #tpu.dimension_semantics<parallel>], iteration_bounds = array<i64: 1, 1>, scalar_prefetch = 0 : i64, scratch_operands = 0 : i64, tpu.core_type = #tpu.core_type<tc>, window_params = [{transform_indices = @transform_0, window_bounds = array<i64: 8, 128>}, {transform_indices = @transform_1, window_bounds = array<i64: 128, 128>}, {transform_indices = @transform_2, window_bounds = array<i64: 1, 128>}, {transform_indices = @transform_3, window_bounds = array<i64: 8, 128>}]} {
    %c0 = arith.constant 0 : index
    %c0_0 = arith.constant 0 : index
    %0 = vector.load %arg2[%c0, %c0_0] : memref<8x128xf32, #tpu.memory_space<vmem>>, vector<8x128xf32>
    %c0_1 = arith.constant 0 : index
    %c0_2 = arith.constant 0 : index
    %1 = vector.load %arg3[%c0_1, %c0_2] : memref<128x128xf32, #tpu.memory_space<vmem>>, vector<128x128xf32>
    %cst = arith.constant dense<0.000000e+00> : vector<8x128xf32>
    %2 = tpu.matmul %0, %1, %cst {dimension_numbers = #tpu.dot_dimension_numbers<[1], [0], [0], [1], [0, 0, 1, 1], [], []>} : vector<8x128xf32>, vector<128x128xf32>, vector<8x128xf32> -> vector<8x128xf32>
    %c0_3 = arith.constant 0 : index
    %c0_4 = arith.constant 0 : index
    %3 = vector.load %arg4[%c0_3, %c0_4] : memref<1x128xf32, #tpu.memory_space<vmem>>, vector<1x128xf32>
    %4 = vector.broadcast %3 : vector<1x128xf32> to vector<8x128xf32>
    %5 = arith.addf %2, %4 : vector<8x128xf32>
    %c0_5 = arith.constant 0 : index
    %c0_6 = arith.constant 0 : index
    %6 = vector.load %arg5[%c0_5, %c0_6] : memref<8x128xf32, #tpu.memory_space<vmem>>, vector<8x128xf32>
    tpu.vector_store %arg5[%c0_5, %c0_6], %5 {strides = array<i32>} : memref<8x128xf32, #tpu.memory_space<vmem>>, vector<8x128xf32>,
    return
  }
  func.func @transform_0(%arg0: i32, %arg1: i32) -> (i32, i32) {
    %c0_i32 = arith.constant 0 : i32
    %c0_i32_0 = arith.constant 0 : i32
    return %arg0, %c0_i32 : i32, i32
  }
  func.func @transform_1(%arg0: i32, %arg1: i32) -> (i32, i32) {
    %c0_i32 = arith.constant 0 : i32
    %c0_i32_0 = arith.constant 0 : i32
    return %c0_i32, %arg1 : i32, i32
  }
  func.func @transform_2(%arg0: i32, %arg1: i32) -> (i32, i32) {
    %c0_i32 = arith.constant 0 : i32
    %c0_i32_0 = arith.constant 0 : i32
    return %c0_i32, %arg1 : i32, i32
  }
  func.func @transform_3(%arg0: i32, %arg1: i32) -> (i32, i32) {
    %c0_i32 = arith.constant 0 : i32
    return %arg0, %arg1 : i32, i32
  }
}

</mosaic_0001>

<llo_original>
// kernel: shallow_ensemble_forward.1
$region0: #{shallow_ensemble_forward.1}
  #allocation0 [shape = 'u32[]', space=smem, size = 0x4, offset = 0x4, fixed_abs, tag = 'smem constant byte address 0x4 - core index']
  #allocation1 [shape = 'u32[144,128]{1,0:T(1,128)}', space=vmem, size = 0x12000, scoped, tag = 'internal scratch']
  %s0 = inlined_call_operand.vmem [shape: f32[8,128], index: 0, kind: input, shape index: {}]
  %s1 = inlined_call_operand.vmem [shape: f32[128,128], index: 1, kind: input, shape index: {}]
  %s2 = inlined_call_operand.vmem [shape: f32[1,128], index: 2, kind: input, shape index: {}]
  %s3 = inlined_call_operand.vmem [shape: f32[8,128], index: 3, kind: output, shape index: {}]
  %s4 = sld [smem:[#allocation0]]
  $region22: #{shallow_ensemble_forward.1} parent=0
    _
  %s6 = ssub.s32 1, %s4
  %s7 = scalar_select 0, %s6, %s4
  // Predicated region
  $region2: #{shallow_ensemble_forward.1} parent=0 // pred_check
    _
  $region3: #{shallow_ensemble_forward.1} parent=0 // pred_check_branch
    %9 = sbr.rel (0) target = $region5
  $region4: #{shallow_ensemble_forward.1} parent=0 // pred_region
    _
  $region5: #{shallow_ensemble_forward.1} parent=0 // pred_fallthru
    _
  // Predicated region
  $region6: #{shallow_ensemble_forward.1} parent=0 // pred_check
    _
  $region7: #{shallow_ensemble_forward.1} parent=0 // pred_check_branch
    %11 = sbr.rel (0) target = $region9
  $region8: #{shallow_ensemble_forward.1} parent=0 // pred_region
    _
  $region9: #{shallow_ensemble_forward.1} parent=0 // pred_fallthru
    _
  // Predicated region
  $region10: #{shallow_ensemble_forward.1} parent=0 // pred_check
    _
  $region11: #{shallow_ensemble_forward.1} parent=0 // pred_check_branch
    %13 = sbr.rel (0) target = $region13
  $region12: #{shallow_ensemble_forward.1} parent=0 // pred_region
    _
  $region13: #{shallow_ensemble_forward.1} parent=0 // pred_fallthru
    _
  %v14 = vld [vmem:[%s0] sm:$0xff]
  %v15 = vld [vmem:[%s1] sm:$0xff]
  %v16 = vld [vmem:[%s1 + $0x8] sm:$0xff]
  %v17 = vld [vmem:[%s1 + $0x10] sm:$0xff]
  %v18 = vld [vmem:[%s1 + $0x18] sm:$0xff]
  %v19 = vld [vmem:[%s1 + $0x20] sm:$0xff]
  %v20 = vld [vmem:[%s1 + $0x28] sm:$0xff]
  %v21 = vld [vmem:[%s1 + $0x30] sm:$0xff]
  %v22 = vld [vmem:[%s1 + $0x38] sm:$0xff]
  %v23 = vld [vmem:[%s1 + $0x40] sm:$0xff]
  %v24 = vld [vmem:[%s1 + $0x48] sm:$0xff]
  %v25 = vld [vmem:[%s1 + $0x50] sm:$0xff]
  %v26 = vld [vmem:[%s1 + $0x58] sm:$0xff]
  %v27 = vld [vmem:[%s1 + $0x60] sm:$0xff]
  %v28 = vld [vmem:[%s1 + $0x68] sm:$0xff]
  %v29 = vld [vmem:[%s1 + $0x70] sm:$0xff]
  %v30 = vld [vmem:[%s1 + $0x78] sm:$0xff]
  %v31 = vld [vmem:[%s2] sm:$0x1]
  %v33 = vlaneseq
  %v34 = vshrl.u32 %v33, 7
  %v35 = vsub.s32 0, %v34
  %v36 = vrot.slane %v31, %v35
  %38 = vmatprep.subr.mxu0 0.0
  %39 = vmatpush1.msra.mxu0 %v15
  %40 = vmatprep.subr.mxu0 0.0
  %41 = vmatpush1.msra.mxu0 %v16
  %42 = vmatprep.subr.mxu0 0.0
  %43 = vmatpush1.msra.mxu0 %v17
  %44 = vmatprep.subr.mxu0 0.0
  %45 = vmatpush1.msra.mxu0 %v18
  %46 = vmatprep.subr.mxu0 0.0
  %47 = vmatpush1.msra.mxu0 %v19
  %48 = vmatprep.subr.mxu0 0.0
  %49 = vmatpush1.msra.mxu0 %v20
  %50 = vmatprep.subr.mxu0 0.0
  %51 = vmatpush1.msra.mxu0 %v21
  %52 = vmatprep.subr.mxu0 0.0
  %53 = vmatpush1.msra.mxu0 %v22
  %54 = vmatprep.subr.mxu0 0.0
  %55 = vmatpush1.msra.mxu0 %v23
  %56 = vmatprep.subr.mxu0 0.0
  %57 = vmatpush1.msra.mxu0 %v24
  %58 = vmatprep.subr.mxu0 0.0
  %59 = vmatpush1.msra.mxu0 %v25
  %60 = vmatprep.subr.mxu0 0.0
  %61 = vmatpush1.msra.mxu0 %v26
  %62 = vmatprep.subr.mxu0 0.0
  %63 = vmatpush1.msra.mxu0 %v27
  %64 = vmatprep.subr.mxu0 0.0
  %65 = vmatpush1.msra.mxu0 %v28
  %66 = vmatprep.subr.mxu0 0.0
  %67 = vmatpush1.msra.mxu0 %v29
  %68 = vmatprep.subr.mxu0 0.0
  %69 = vmatpush1.msra.mxu0 %v30
  %70 = vmatprep.subr.mxu0 0.0
  %71 = vmatpush1.msra.mxu0 0.0
  %72 = vmatprep.subr.mxu0 0.0
  %73 = vmatpush1.msra.mxu0 0.0
  %74 = vmatprep.subr.mxu0 0.0
  %75 = vmatpush1.msra.mxu0 0.0
  %76 = vmatprep.subr.mxu0 0.0
  %77 = vmatpush1.msra.mxu0 0.0
  %78 = vmatprep.subr.mxu0 0.0
  %79 = vmatpush1.msra.mxu0 0.0
  %80 = vmatprep.subr.mxu0 0.0
  %81 = vmatpush1.msra.mxu0 0.0
  %82 = vmatprep.subr.mxu0 0.0
  %83 = vmatpush1.msra.mxu0 0.0
  %84 = vmatprep.subr.mxu0 0.0
  %85 = vmatpush1.msra.mxu0 0.0
  %86 = vmatprep.subr.mxu0 0.0
  %87 = vmatpush1.msra.mxu0 0.0
  %88 = vmatprep.subr.mxu0 0.0
  %89 = vmatpush1.msra.mxu0 0.0
  %90 = vmatprep.subr.mxu0 0.0
  %91 = vmatpush1.msra.mxu0 0.0
  %92 = vmatprep.subr.mxu0 0.0
  %93 = vmatpush1.msra.mxu0 0.0
  %94 = vmatprep.subr.mxu0 0.0
  %95 = vmatpush1.msra.mxu0 0.0
  %96 = vmatprep.subr.mxu0 0.0
  %97 = vmatpush1.msra.mxu0 0.0
  %98 = vmatprep.subr.mxu0 0.0
  %99 = vmatpush1.msra.mxu0 0.0
  %100 = vmatprep.subr.mxu0 0.0
  %101 = vmatpush1.msra.mxu0 0.0
  %102 = vmatprep.mubr.f32.mxu0 0.0
  %103 = vmatmul.mubr.f32.gmra.mrb[0].mxu0 %v14
  %v104 = vpop.f32.mrb[0].mxu0
  %v105 = vadd.f32 %v36, %v104
  %v106 = vpop.f32.mrb[0].mxu0
  %107 = vdwg.mxu0
  %108 = vst [vmem:[%s3] sm:$0xff] %v105
  // Predicated region
  $region14: #{shallow_ensemble_forward.1} parent=0 // pred_check
    _
  $region15: #{shallow_ensemble_forward.1} parent=0 // pred_check_branch
    %110 = sbr.rel (0) target = $region17
  $region16: #{shallow_ensemble_forward.1} parent=0 // pred_region
    _
  $region17: #{shallow_ensemble_forward.1} parent=0 // pred_fallthru
    _
  // Predicated region
  $region18: #{shallow_ensemble_forward.1} parent=0 // pred_check
    _
  $region19: #{shallow_ensemble_forward.1} parent=0 // pred_check_branch
    %112 = sbr.rel (0) target = $region21
  $region20: #{shallow_ensemble_forward.1} parent=0 // pred_region
    _
  $region21: #{shallow_ensemble_forward.1} parent=0 // pred_fallthru
    _

</llo_original>
